<compile_context>
chip_gen: v6e
topology: v6e:2x2x1
jax: 0.10.0
libtpu: 0.0.40
codegen_flags: <defaults>
</compile_context>

<pallas_src>
import jax
import jax.numpy as jnp
from jax.experimental import pallas as pl
from jax.experimental.pallas import tpu as pltpu


def _round_up(x, m):
    return ((x + m - 1) // m) * m


# ------------------------------ kernels ------------------------------

def _gcn_layer1_kernel(nnz_ref, col_ref, adj_ref, x_ref, w1_ref, b1_ref,
                       w2_ref, mask_ref, g_ref, acc_ref):
    """acc = sum over nonzero column blocks of A_hat[i,k] @ X[k];
       G[i] = (mask * relu(acc @ W1 + b1)) @ W2."""
    i = pl.program_id(0)
    k = pl.program_id(1)

    @pl.when(k == 0)
    def _init():
        acc_ref[...] = jnp.zeros_like(acc_ref)

    # Block-sparse skip: only accumulate real (nonzero) adjacency tiles.
    @pl.when(k < nnz_ref[i])
    def _accum():
        acc_ref[...] += jnp.dot(adj_ref[...], x_ref[...],
                                preferred_element_type=jnp.float32)

    @pl.when(k == pl.num_programs(1) - 1)
    def _finalize():
        # bf16 operands (native MXU path), f32 accumulation.
        h = jnp.dot(acc_ref[...].astype(jnp.bfloat16), w1_ref[...],
                    preferred_element_type=jnp.float32) + b1_ref[...]
        h = jnp.maximum(h, 0.0) * mask_ref[...]          # ReLU + inverted dropout
        g_ref[...] = jnp.dot(h.astype(jnp.bfloat16), w2_ref[...],
                             preferred_element_type=jnp.float32).astype(g_ref.dtype)


def _gcn_layer2_kernel(nnz_ref, col_ref, adj_ref, g_ref, b2_ref, out_ref,
                       acc_ref):
    """out[i] = sum over nonzero column blocks of A_hat[i,k] @ G[k] + b2."""
    i = pl.program_id(0)
    k = pl.program_id(1)

    @pl.when(k == 0)
    def _init():
        acc_ref[...] = jnp.zeros_like(acc_ref)

    @pl.when(k < nnz_ref[i])
    def _accum():
        acc_ref[...] += jnp.dot(adj_ref[...], g_ref[...],
                                preferred_element_type=jnp.float32)

    @pl.when(k == pl.num_programs(1) - 1)
    def _finalize():
        out_ref[...] = (acc_ref[...] + b2_ref[...]).astype(out_ref.dtype)


# ------------------------------ JAX glue ------------------------------

def normalized_adjacency(edge_index, num_nodes):
    """Dense A_hat = D^-1/2 (A + I) D^-1/2 (GCNConv default normalization)."""
    src, dst = edge_index[0], edge_index[1]
    a = jnp.zeros((num_nodes, num_nodes), jnp.float32)
    a = a.at[dst, src].set(1.0)                   # message j -> i stored at A[i, j]
    diag = jnp.arange(num_nodes)
    a = a.at[diag, diag].set(1.0)                 # self-loops
    deg = a.sum(axis=1)
    d_inv_sqrt = jnp.where(deg > 0, jax.lax.rsqrt(deg), 0.0)
    return d_inv_sqrt[:, None] * a * d_inv_sqrt[None, :]


def _vmem_bytes(tile_m, tile_k, fin_p, hid_p, out_p):
    """Rough per-step VMEM footprint of layer 1 (double-buffered streams + acc)."""
    est = 0
    est += 2 * tile_m * tile_k * 2      # A_hat tile (bf16), double-buffered
    est += 2 * tile_k * fin_p * 2       # X rows (bf16)
    est += 2 * fin_p * hid_p * 2        # W1 (bf16, resident)
    est += 2 * hid_p * 4                # b1 (f32)
    est += 2 * hid_p * out_p * 2        # W2 (bf16, resident)
    est += 2 * tile_m * hid_p * 2       # dropout mask (bf16)
    est += 2 * tile_m * out_p * 2       # G output (bf16)
    est += tile_m * fin_p * 4           # f32 accumulator scratch
    return est


def _choose_tiles(n, fin_p, hid_p, out_p, vmem_budget=48 * 1024 * 1024):
    """(n_pad, tile_m, tile_k): 512-wide reduction tiles; row tiles as large as
    the VMEM budget allows while keeping >= 2 row blocks (v7x megacore)."""
    n_pad128 = _round_up(n, 128)
    if n_pad128 <= 512:
        return n_pad128, n_pad128, n_pad128        # single tile, grid = (1, 1)
    tile_k = 512
    n_pad = _round_up(n, tile_k)                   # never degrade below 512-wide tiles
    tile_m = tile_k
    for cand in (2048, 1024):
        if (n_pad % cand == 0 and n_pad // cand >= 2
                and _vmem_bytes(cand, tile_k, fin_p, hid_p, out_p) <= vmem_budget):
            tile_m = cand
            break
    return n_pad, tile_m, tile_k


def prepare_graph(edge_index, num_nodes, f_in, hidden, f_out):
    """Padded bf16 A_hat + block-sparse tile metadata.

    For a static graph, call once and pass the result to two_layer_gcn via
    graph=... so the O(N^2) build is not repeated per forward pass."""
    fin_p, hid_p, out_p = (_round_up(c, 128) for c in (f_in, hidden, f_out))
    n_pad, tile_m, tile_k = _choose_tiles(num_nodes, fin_p, hid_p, out_p)

    adj = normalized_adjacency(edge_index, num_nodes)
    adj_p = jnp.zeros((n_pad, n_pad), jnp.bfloat16).at[:num_nodes, :num_nodes].set(
        adj.astype(jnp.bfloat16))

    row_blocks = n_pad // tile_m
    col_blocks = n_pad // tile_k
    blk_nonzero = jnp.any(
        adj_p.reshape(row_blocks, tile_m, col_blocks, tile_k) != 0, axis=(1, 3))
    nnz = blk_nonzero.sum(axis=1).astype(jnp.int32)            # per row block
    k_idx = jnp.broadcast_to(jnp.arange(col_blocks, dtype=jnp.int32),
                             (row_blocks, col_blocks))
    # Distinct sort keys: nonzero column blocks first (ascending), zeros after.
    order = jnp.argsort(jnp.where(blk_nonzero, k_idx, col_blocks + k_idx),
                        axis=1).astype(jnp.int32)
    # Past nnz, repeat the last nonzero block index so its DMA is elided.
    last = jnp.take_along_axis(order, jnp.maximum(nnz - 1, 0)[:, None], axis=1)
    col_ids = jnp.where(k_idx < nnz[:, None], order, last).astype(jnp.int32)

    return dict(n_pad=n_pad, tile_m=tile_m, tile_k=tile_k,
                adj_p=adj_p, nnz=nnz, col_ids=col_ids)


def two_layer_gcn(params, x, edge_index, drpt, *, dropout_key=None,
                  training=True, graph=None):
    """Forward pass matching TwoLayerGCN.forward(x, edge_index, drpt)."""
    w1, b1, w2, b2 = params
    n, f_in = x.shape
    hid = w1.shape[1]
    f_out = w2.shape[1]
    fin_p, hid_p, out_p = (_round_up(c, 128) for c in (f_in, hid, f_out))

    if graph is None:
        graph = prepare_graph(edge_index, n, f_in, hid, f_out)
    n_pad, tile_m, tile_k = graph["n_pad"], graph["tile_m"], graph["tile_k"]
    adj_p, nnz, col_ids = graph["adj_p"], graph["nnz"], graph["col_ids"]

    # ---- pad operands: feature dims to 128 lanes (lane-dense, (8,128)-legal) ----
    x_p = jnp.zeros((n_pad, fin_p), jnp.bfloat16).at[:n, :f_in].set(
        x.astype(jnp.bfloat16))
    w1_p = jnp.zeros((fin_p, hid_p), jnp.bfloat16).at[:f_in, :hid].set(
        w1.astype(jnp.bfloat16))
    b1_p = jnp.zeros((1, hid_p), jnp.float32).at[:, :hid].set(
        b1.reshape(1, -1).astype(jnp.float32))
    w2_p = jnp.zeros((hid_p, out_p), jnp.bfloat16).at[:hid, :f_out].set(
        w2.astype(jnp.bfloat16))
    b2_p = jnp.zeros((1, out_p), jnp.float32).at[:, :f_out].set(
        b2.reshape(1, -1).astype(jnp.float32))

    # ---- dropout mask (inverted scaling, like F.dropout in training mode) ----
    p = float(drpt)
    if training and p > 0.0 and dropout_key is not None:
        if p >= 1.0:
            mask = jnp.zeros((n_pad, hid_p), jnp.bfloat16)
        else:
            keep = jax.random.bernoulli(dropout_key, 1.0 - p, (n_pad, hid_p))
            mask = (keep.astype(jnp.float32) * (1.0 / (1.0 - p))).astype(jnp.bfloat16)
    else:
        mask = jnp.ones((n_pad, hid_p), jnp.bfloat16)

    grid = (n_pad // tile_m, n_pad // tile_k)
    vmem_limit = int(min(64 * 1024 * 1024,
                         max(32 * 1024 * 1024,
                             _vmem_bytes(tile_m, tile_k, fin_p, hid_p, out_p)
                             + 8 * 1024 * 1024)))
    cparams = pltpu.CompilerParams(
        dimension_semantics=("parallel", "arbitrary"),
        vmem_limit_bytes=vmem_limit)

    # ---- layer 1 (+ ReLU + dropout + layer-2 projection W2) ----
    g = pl.pallas_call(
        _gcn_layer1_kernel,
        out_shape=jax.ShapeDtypeStruct((n_pad, out_p), jnp.bfloat16),
        grid_spec=pltpu.PrefetchScalarGridSpec(
            num_scalar_prefetch=2,
            grid=grid,
            in_specs=[
                pl.BlockSpec((tile_m, tile_k),
                             lambda i, k, nnz, col: (i, col[i, k])),     # A_hat tile
                pl.BlockSpec((tile_k, fin_p),
                             lambda i, k, nnz, col: (col[i, k], 0)),     # X rows
                pl.BlockSpec((fin_p, hid_p), lambda i, k, nnz, col: (0, 0)),  # W1
                pl.BlockSpec((1, hid_p), lambda i, k, nnz, col: (0, 0)),      # b1
                pl.BlockSpec((hid_p, out_p), lambda i, k, nnz, col: (0, 0)),  # W2
                pl.BlockSpec((tile_m, hid_p), lambda i, k, nnz, col: (i, 0)), # mask
            ],
            out_specs=pl.BlockSpec((tile_m, out_p), lambda i, k, nnz, col: (i, 0)),
            scratch_shapes=[pltpu.VMEM((tile_m, fin_p), jnp.float32)]),
        compiler_params=cparams,
    )(nnz, col_ids, adj_p, x_p, w1_p, b1_p, w2_p, mask)

    # ---- layer 2: out = A_hat @ G + b2 ----
    y = pl.pallas_call(
        _gcn_layer2_kernel,
        out_shape=jax.ShapeDtypeStruct((n_pad, out_p), jnp.float32),
        grid_spec=pltpu.PrefetchScalarGridSpec(
            num_scalar_prefetch=2,
            grid=grid,
            in_specs=[
                pl.BlockSpec((tile_m, tile_k),
                             lambda i, k, nnz, col: (i, col[i, k])),     # A_hat tile
                pl.BlockSpec((tile_k, out_p),
                             lambda i, k, nnz, col: (col[i, k], 0)),     # G rows
                pl.BlockSpec((1, out_p), lambda i, k, nnz, col: (0, 0)), # b2
            ],
            out_specs=pl.BlockSpec((tile_m, out_p), lambda i, k, nnz, col: (i, 0)),
            scratch_shapes=[pltpu.VMEM((tile_m, out_p), jnp.float32)]),
        compiler_params=cparams,
    )(nnz, col_ids, adj_p, g, b2_p)

    return y[:n, :f_out]


def init_params(key, input_channels, hidden_channels, output_channels):
    """Glorot-uniform weights (as in GCNConv's internal Linear), zero biases."""
    k1, k2 = jax.random.split(key)

    def glorot(k, fan_in, fan_out):
        limit = jnp.sqrt(6.0 / (fan_in + fan_out))
        return jax.random.uniform(k, (fan_in, fan_out), jnp.float32, -limit, limit)

    w1 = glorot(k1, input_channels, hidden_channels)
    b1 = jnp.zeros((hidden_channels,), jnp.float32)
    w2 = glorot(k2, hidden_channels, output_channels)
    b2 = jnp.zeros((output_channels,), jnp.float32)
    return (w1, b1, w2, b2)


if __name__ == "__main__":
    N, IN_C, HID_C, OUT_C = 16, 8, 32, 4
    DRPT = 0.5

    key = jax.random.PRNGKey(0)
    k_param, k_x, k_drop = jax.random.split(key, 3)

    params = init_params(k_param, IN_C, HID_C, OUT_C)
    x = jax.random.normal(k_x, (N, IN_C), jnp.float32)

    # Undirected ring graph: edges i <-> (i+1) mod N, shape (2, 2N)
    idx = jnp.arange(N)
    nxt = (idx + 1) % N
    edge_index = jnp.stack(
        [jnp.concatenate([idx, nxt]), jnp.concatenate([nxt, idx])], axis=0
    ).astype(jnp.int32)

    # Static graph: build adjacency + block-sparse metadata once and reuse.
    graph = prepare_graph(edge_index, N, IN_C, HID_C, OUT_C)

    out = two_layer_gcn(params, x, edge_index, DRPT,
                        dropout_key=k_drop, training=True, graph=graph)
    jax.block_until_ready(out)

    assert out.shape == (N, OUT_C)
    assert bool(jnp.all(jnp.isfinite(out)))
    print("KERNEL_OK")
</pallas_src>

<mosaic_0001>
module attributes {stable_mosaic.version = 11 : i64} {
  func.func @_gcn_layer1_kernel(%arg0: i32, %arg1: i32, %arg2: memref<1xi32, #tpu.memory_space<smem>>, %arg3: memref<1x1xi32, #tpu.memory_space<smem>>, %arg4: memref<128x128xbf16, #tpu.memory_space<vmem>>, %arg5: memref<128x128xbf16, #tpu.memory_space<vmem>>, %arg6: memref<128x128xbf16, #tpu.memory_space<vmem>>, %arg7: memref<1x128xf32, #tpu.memory_space<vmem>>, %arg8: memref<128x128xbf16, #tpu.memory_space<vmem>>, %arg9: memref<128x128xbf16, #tpu.memory_space<vmem>>, %arg10: memref<128x128xbf16, #tpu.memory_space<vmem>>, %arg11: memref<128x128xf32, #tpu.memory_space<vmem>>) attributes {dimension_semantics = [#tpu.dimension_semantics<parallel>, #tpu.dimension_semantics<arbitrary>], iteration_bounds = array<i64: 1, 1>, scalar_prefetch = 2 : i64, scratch_operands = 1 : i64, tpu.core_type = #tpu.core_type<tc>, window_params = [{transform_indices = @transform_0, window_bounds = array<i64: 128, 128>}, {transform_indices = @transform_1, window_bounds = array<i64: 128, 128>}, {pipeline_mode = #tpu.pipeline_mode<synchronous>, transform_indices = @transform_2, window_bounds = array<i64: 128, 128>}, {pipeline_mode = #tpu.pipeline_mode<synchronous>, transform_indices = @transform_3, window_bounds = array<i64: 1, 128>}, {pipeline_mode = #tpu.pipeline_mode<synchronous>, transform_indices = @transform_4, window_bounds = array<i64: 128, 128>}, {transform_indices = @transform_5, window_bounds = array<i64: 128, 128>}, {transform_indices = @transform_6, window_bounds = array<i64: 128, 128>}]} {
    %c0_i32 = arith.constant 0 : i32
    %0 = arith.cmpi eq, %arg1, %c0_i32 : i32
    %1 = arith.extui %0 : i1 to i32
    %c0_i32_0 = arith.constant 0 : i32
    %2 = arith.cmpi ne, %1, %c0_i32_0 : i32
    scf.if %2 {
      %cst = arith.constant 0.000000e+00 : f32
      %11 = vector.broadcast %cst : f32 to vector<128x128xf32>
      %c0 = arith.constant 0 : index
      %c0_4 = arith.constant 0 : index
      %12 = vector.load %arg11[%c0, %c0_4] : memref<128x128xf32, #tpu.memory_space<vmem>>, vector<128x128xf32>
      tpu.vector_store %arg11[%c0, %c0_4], %11 {strides = array<i32>} : memref<128x128xf32, #tpu.memory_space<vmem>>, vector<128x128xf32>,
    } else {
    }
    %3 = arith.index_cast %arg0 : i32 to index
    %4 = memref.load %arg2[%3] : memref<1xi32, #tpu.memory_space<smem>>
    %5 = arith.cmpi slt, %arg1, %4 : i32
    %6 = arith.extui %5 : i1 to i32
    %c0_i32_1 = arith.constant 0 : i32
    %7 = arith.cmpi ne, %6, %c0_i32_1 : i32
    scf.if %7 {
      %c0 = arith.constant 0 : index
      %c0_4 = arith.constant 0 : index
      %11 = vector.load %arg11[%c0, %c0_4] : memref<128x128xf32, #tpu.memory_space<vmem>>, vector<128x128xf32>
      %c0_5 = arith.constant 0 : index
      %c0_6 = arith.constant 0 : index
      %12 = vector.load %arg4[%c0_5, %c0_6] : memref<128x128xbf16, #tpu.memory_space<vmem>>, vector<128x128xbf16>
      %c0_7 = arith.constant 0 : index
      %c0_8 = arith.constant 0 : index
      %13 = vector.load %arg5[%c0_7, %c0_8] : memref<128x128xbf16, #tpu.memory_space<vmem>>, vector<128x128xbf16>
      %cst = arith.constant dense<0.000000e+00> : vector<128x128xf32>
      %14 = tpu.matmul %12, %13, %cst {dimension_numbers = #tpu.dot_dimension_numbers<[1], [0], [0], [1], [0, 0, 1, 1], [], []>} : vector<128x128xbf16>, vector<128x128xbf16>, vector<128x128xf32> -> vector<128x128xf32>
      %15 = arith.addf %11, %14 : vector<128x128xf32>
      %c0_9 = arith.constant 0 : index
      %c0_10 = arith.constant 0 : index
      %16 = vector.load %arg11[%c0_9, %c0_10] : memref<128x128xf32, #tpu.memory_space<vmem>>, vector<128x128xf32>
      tpu.vector_store %arg11[%c0_9, %c0_10], %15 {strides = array<i32>} : memref<128x128xf32, #tpu.memory_space<vmem>>, vector<128x128xf32>,
    } else {
    }
    %c0_i32_2 = arith.constant 0 : i32
    %8 = arith.cmpi eq, %arg1, %c0_i32_2 : i32
    %9 = arith.extui %8 : i1 to i32
    %c0_i32_3 = arith.constant 0 : i32
    %10 = arith.cmpi ne, %9, %c0_i32_3 : i32
    scf.if %10 {
      %c0 = arith.constant 0 : index
      %c0_4 = arith.constant 0 : index
      %11 = vector.load %arg11[%c0, %c0_4] : memref<128x128xf32, #tpu.memory_space<vmem>>, vector<128x128xf32>
      %12 = arith.truncf %11 : vector<128x128xf32> to vector<128x128xbf16>
      %c0_5 = arith.constant 0 : index
      %c0_6 = arith.constant 0 : index
      %13 = vector.load %arg6[%c0_5, %c0_6] : memref<128x128xbf16, #tpu.memory_space<vmem>>, vector<128x128xbf16>
      %cst = arith.constant dense<0.000000e+00> : vector<128x128xf32>
      %14 = tpu.matmul %12, %13, %cst {dimension_numbers = #tpu.dot_dimension_numbers<[1], [0], [0], [1], [0, 0, 1, 1], [], []>} : vector<128x128xbf16>, vector<128x128xbf16>, vector<128x128xf32> -> vector<128x128xf32>
      %c0_7 = arith.constant 0 : index
      %c0_8 = arith.constant 0 : index
      %15 = vector.load %arg7[%c0_7, %c0_8] : memref<1x128xf32, #tpu.memory_space<vmem>>, vector<1x128xf32>
      %16 = vector.broadcast %15 : vector<1x128xf32> to vector<128x128xf32>
      %17 = arith.addf %14, %16 : vector<128x128xf32>
      %cst_9 = arith.constant 0.000000e+00 : f32
      %18 = vector.broadcast %cst_9 : f32 to vector<128x128xf32>
      %19 = arith.maximumf %17, %18 : vector<128x128xf32>
      %c0_10 = arith.constant 0 : index
      %c0_11 = arith.constant 0 : index
      %20 = vector.load %arg9[%c0_10, %c0_11] : memref<128x128xbf16, #tpu.memory_space<vmem>>, vector<128x128xbf16>
      %21 = arith.extf %20 : vector<128x128xbf16> to vector<128x128xf32>
      %22 = arith.mulf %19, %21 : vector<128x128xf32>
      %23 = arith.truncf %22 : vector<128x128xf32> to vector<128x128xbf16>
      %c0_12 = arith.constant 0 : index
      %c0_13 = arith.constant 0 : index
      %24 = vector.load %arg8[%c0_12, %c0_13] : memref<128x128xbf16, #tpu.memory_space<vmem>>, vector<128x128xbf16>
      %cst_14 = arith.constant dense<0.000000e+00> : vector<128x128xf32>
      %25 = tpu.matmul %23, %24, %cst_14 {dimension_numbers = #tpu.dot_dimension_numbers<[1], [0], [0], [1], [0, 0, 1, 1], [], []>} : vector<128x128xbf16>, vector<128x128xbf16>, vector<128x128xf32> -> vector<128x128xf32>
      %26 = arith.truncf %25 : vector<128x128xf32> to vector<128x128xbf16>
      %c0_15 = arith.constant 0 : index
      %c0_16 = arith.constant 0 : index
      %27 = vector.load %arg10[%c0_15, %c0_16] : memref<128x128xbf16, #tpu.memory_space<vmem>>, vector<128x128xbf16>
      tpu.vector_store %arg10[%c0_15, %c0_16], %26 {strides = array<i32>} : memref<128x128xbf16, #tpu.memory_space<vmem>>, vector<128x128xbf16>,
    } else {
    }
    return
  }
  func.func @transform_0(%arg0: i32, %arg1: i32, %arg2: memref<1xi32, #tpu.memory_space<smem>>, %arg3: memref<1x1xi32, #tpu.memory_space<smem>>) -> (i32, i32) {
    %0 = arith.index_cast %arg0 : i32 to index
    %1 = arith.index_cast %arg1 : i32 to index
    %2 = memref.load %arg3[%0, %1] : memref<1x1xi32, #tpu.memory_space<smem>>
    %c0_i32 = arith.constant 0 : i32
    return %arg0, %2 : i32, i32
  }
  func.func @transform_1(%arg0: i32, %arg1: i32, %arg2: memref<1xi32, #tpu.memory_space<smem>>, %arg3: memref<1x1xi32, #tpu.memory_space<smem>>) -> (i32, i32) {
    %0 = arith.index_cast %arg0 : i32 to index
    %1 = arith.index_cast %arg1 : i32 to index
    %2 = memref.load %arg3[%0, %1] : memref<1x1xi32, #tpu.memory_space<smem>>
    %c0_i32 = arith.constant 0 : i32
    %c0_i32_0 = arith.constant 0 : i32
    return %2, %c0_i32 : i32, i32
  }
  func.func @transform_2(%arg0: i32, %arg1: i32, %arg2: memref<1xi32, #tpu.memory_space<smem>>, %arg3: memref<1x1xi32, #tpu.memory_space<smem>>) -> (i32, i32) {
    %c0_i32 = arith.constant 0 : i32
    %c0_i32_0 = arith.constant 0 : i32
    %c0_i32_1 = arith.constant 0 : i32
    return %c0_i32, %c0_i32_0 : i32, i32
  }
  func.func @transform_3(%arg0: i32, %arg1: i32, %arg2: memref<1xi32, #tpu.memory_space<smem>>, %arg3: memref<1x1xi32, #tpu.memory_space<smem>>) -> (i32, i32) {
    %c0_i32 = arith.constant 0 : i32
    %c0_i32_0 = arith.constant 0 : i32
    %c0_i32_1 = arith.constant 0 : i32
    return %c0_i32, %c0_i32_0 : i32, i32
  }
  func.func @transform_4(%arg0: i32, %arg1: i32, %arg2: memref<1xi32, #tpu.memory_space<smem>>, %arg3: memref<1x1xi32, #tpu.memory_space<smem>>) -> (i32, i32) {
    %c0_i32 = arith.constant 0 : i32
    %c0_i32_0 = arith.constant 0 : i32
    %c0_i32_1 = arith.constant 0 : i32
    return %c0_i32, %c0_i32_0 : i32, i32
  }
  func.func @transform_5(%arg0: i32, %arg1: i32, %arg2: memref<1xi32, #tpu.memory_space<smem>>, %arg3: memref<1x1xi32, #tpu.memory_space<smem>>) -> (i32, i32) {
    %c0_i32 = arith.constant 0 : i32
    %c0_i32_0 = arith.constant 0 : i32
    return %arg0, %c0_i32 : i32, i32
  }
  func.func @transform_6(%arg0: i32, %arg1: i32, %arg2: memref<1xi32, #tpu.memory_space<smem>>, %arg3: memref<1x1xi32, #tpu.memory_space<smem>>) -> (i32, i32) {
    %c0_i32 = arith.constant 0 : i32
    %c0_i32_0 = arith.constant 0 : i32
    return %arg0, %c0_i32 : i32, i32
  }
}

</mosaic_0001>

<llo_original>
// kernel: tpu_custom_call.1
$region0: #{tpu_custom_call.1}
  #allocation0 [shape = 'u32[]', space=smem, size = 0x4, offset = 0x4, fixed_abs, tag = 'smem constant byte address 0x4 - core index']
  #allocation1 [shape = 'u32[144,128]{1,0:T(1,128)}', space=vmem, size = 0x12000, scoped, tag = 'internal scratch']
  #allocation2 [shape = 'f32[128,128]{1,0:T(8,128)}', space=vmem, size = 0x10000, scoped, tag = 'scratch operand']
  #allocation3 [shape = 's32[1]{0}', space=sflag, size = 0x4, scoped, tag = 'scoped memory for tpu_custom_call.1']
  #allocation4 [shape = 's32[1]{0:T(128)S(6)}', space=smem, size = 0x200, scoped, tag = 'prefetched SMEM operand 0']
  #allocation5 [shape = 's32[1,1]{1,0:T(1,128)S(6)}', space=smem, size = 0x200, scoped, tag = 'prefetched SMEM operand 1']
  %s0 = inlined_call_operand.<no memory space> [shape: s32[1], index: 0, kind: input, shape index: {}]
  %s1 = inlined_call_operand.<no memory space> [shape: s32[1,1], index: 1, kind: input, shape index: {}]
  %s2 = inlined_call_operand.hbm [shape: bf16[128,128], index: 2, kind: input, shape index: {}]
  %s3 = inlined_call_operand.hbm [shape: bf16[128,128], index: 3, kind: input, shape index: {}]
  %s4 = inlined_call_operand.hbm [shape: bf16[128,128], index: 4, kind: input, shape index: {}]
  %s5 = inlined_call_operand.vmem [shape: f32[1,128], index: 5, kind: input, shape index: {}]
  %s6 = inlined_call_operand.hbm [shape: bf16[128,128], index: 6, kind: input, shape index: {}]
  %s7 = inlined_call_operand.hbm [shape: bf16[128,128], index: 7, kind: input, shape index: {}]
  %s8 = inlined_call_operand.hbm [shape: bf16[128,128], index: 8, kind: output, shape index: {}]
  %s9 = sld [smem:[#allocation0]]
  $region66: #{tpu_custom_call.1} parent=0
    _
  %s11 = ssub.s32 1, %s9
  %s12 = scalar_select 0, %s11, %s9
  %13 = sst [smem:[#allocation4]] %s0
  %14 = sst [smem:[#allocation5]] %s1
  $region1: #{tpu_custom_call.1} parent=0
    #allocation6 [shape = 'u8[32768]{0}', space=vmem, size = 0x8000, scoped, tag = 'input window, operand 2, single buffered']
    #allocation7 [shape = 's32[1]{0}', space=sflag, size = 0x4, scoped, tag = 'scoped memory for tpu_custom_call.1']
    #allocation8 [shape = 's32[1]{0}', space=sflag, size = 0x4, scoped, tag = 'scoped memory for tpu_custom_call.1']
    #allocation9 [shape = 'u8[32768]{0}', space=vmem, size = 0x8000, scoped, tag = 'input window, operand 3, single buffered']
    #allocation10 [shape = 's32[1]{0}', space=sflag, size = 0x4, scoped, tag = 'scoped memory for tpu_custom_call.1']
    #allocation11 [shape = 'u8[32768]{0}', space=vmem, size = 0x8000, scoped, tag = 'input window, operand 4, single buffered']
    #allocation12 [shape = 'u8[32768]{0}', space=vmem, size = 0x8000, scoped, tag = 'input window, operand 6, single buffered']
    #allocation13 [shape = 's32[1]{0}', space=sflag, size = 0x4, scoped, tag = 'scoped memory for tpu_custom_call.1']
    #allocation14 [shape = 'u8[32768]{0}', space=vmem, size = 0x8000, scoped, tag = 'input window, operand 7, single buffered']
    #allocation15 [shape = 'u8[32768]{0}', space=vmem, size = 0x8000, scoped, tag = 'output window, operand 0, single buffered']
    %15 = vsyncpa [#allocation7], 0
    %16 = vsyncpa [#allocation10], 0
    %17 = vsyncpa [#allocation13], 0
    %18 = vsyncpa [#allocation8], 0
    // Predicated region
    $region2: #{tpu_custom_call.1} parent=1 // pred_check
      _
    $region3: #{tpu_custom_call.1} parent=1 // pred_check_branch
      %20 = sbr.rel (0) target = $region5
    $region4: #{tpu_custom_call.1} parent=1 // pred_region
      %s21 = sadd.s32 0, 0
      %s22 = smul.u32 %s21, 128
      %s23 = sadd.s32 %s22, 0
      %s24 = sld [smem:[#allocation5 + %s23]]
      %s26 = ssub.s32 1024, 1024
      %27 = vsyncadd [#allocation7], %s26
      %s28 = smul.addr %s24, 64
      %s29 = scalar_lea.hbm %s2, %s28
      %s30 = sshll.u32 [#allocation6], 4
      %s31 = int_to_ptr.vmem [resolvable:$true] %s30
      %36 = dma.hbm_to_vmem [thread:$0]  %s29, 1024, %s31, [#allocation7], 64, 64, 4
    $region5: #{tpu_custom_call.1} parent=1 // pred_fallthru
      _
    // Predicated region
    $region6: #{tpu_custom_call.1} parent=1 // pred_check
      _
    $region7: #{tpu_custom_call.1} parent=1 // pred_check_branch
      %38 = sbr.rel (0) target = $region9
    $region8: #{tpu_custom_call.1} parent=1 // pred_region
      %s39 = sadd.s32 0, 0
      %s40 = smul.u32 %s39, 128
      %s41 = sadd.s32 %s40, 0
      %s42 = sld [smem:[#allocation5 + %s41]]
      %s43 = smul.u32 16, %s42
      %s45 = ssub.s32 1024, 1024
      %46 = vsyncadd [#allocation10], %s45
      %s47 = smul.addr %s43, 64
      %s48 = scalar_lea.hbm %s3, %s47
      %s49 = sshll.u32 [#allocation9], 4
      %s50 = int_to_ptr.vmem [resolvable:$true] %s49
      %55 = dma.hbm_to_vmem [thread:$0]  %s48, 1024, %s50, [#allocation10], 64, 64, 4
    $region9: #{tpu_custom_call.1} parent=1 // pred_fallthru
      _
    // Predicated region
    $region10: #{tpu_custom_call.1} parent=1 // pred_check
      _
    $region11: #{tpu_custom_call.1} parent=1 // pred_check_branch
      %57 = sbr.rel (0) target = $region13
    $region12: #{tpu_custom_call.1} parent=1 // pred_region
      %s59 = ssub.s32 1024, 1024
      %60 = vsyncadd [#allocation10], %s59
      %s61 = sshll.u32 [#allocation11], 4
      %s62 = int_to_ptr.vmem [resolvable:$true] %s61
      %67 = dma.hbm_to_vmem [thread:$0]  %s4, 1024, %s62, [#allocation10], 64, 64, 4
    $region13: #{tpu_custom_call.1} parent=1 // pred_fallthru
      _
    // Predicated region
    $region14: #{tpu_custom_call.1} parent=1 // pred_check
      _
    $region15: #{tpu_custom_call.1} parent=1 // pred_check_branch
      %69 = sbr.rel (0) target = $region17
    $region16: #{tpu_custom_call.1} parent=1 // pred_region
      _
    $region17: #{tpu_custom_call.1} parent=1 // pred_fallthru
      _
    // Predicated region
    $region18: #{tpu_custom_call.1} parent=1 // pred_check
      _
    $region19: #{tpu_custom_call.1} parent=1 // pred_check_branch
      %71 = sbr.rel (0) target = $region21
    $region20: #{tpu_custom_call.1} parent=1 // pred_region
      %s73 = ssub.s32 1024, 1024
      %74 = vsyncadd [#allocation13], %s73
      %s75 = sshll.u32 [#allocation12], 4
      %s76 = int_to_ptr.vmem [resolvable:$true] %s75
      %81 = dma.hbm_to_vmem [thread:$0]  %s6, 1024, %s76, [#allocation13], 64, 64, 4
    $region21: #{tpu_custom_call.1} parent=1 // pred_fallthru
      _
    // Predicated region
    $region22: #{tpu_custom_call.1} parent=1 // pred_check
      _
    $region23: #{tpu_custom_call.1} parent=1 // pred_check_branch
      %83 = sbr.rel (0) target = $region25
    $region24: #{tpu_custom_call.1} parent=1 // pred_region
      %s85 = ssub.s32 1024, 1024
      %86 = vsyncadd [#allocation13], %s85
      %s87 = sshll.u32 [#allocation14], 4
      %s88 = int_to_ptr.vmem [resolvable:$true] %s87
      %93 = dma.hbm_to_vmem [thread:$0]  %s7, 1024, %s88, [#allocation13], 64, 64, 4
    $region25: #{tpu_custom_call.1} parent=1 // pred_fallthru
      _
    // Predicated region
    $region26: #{tpu_custom_call.1} parent=1 // pred_check
      _
    $region27: #{tpu_custom_call.1} parent=1 // pred_check_branch
      %95 = sbr.rel (0) target = $region29
    $region28: #{tpu_custom_call.1} parent=1 // pred_region
      %96 = dma.done [#allocation7], 1024
    $region29: #{tpu_custom_call.1} parent=1 // pred_fallthru
      _
    // Predicated region
    $region30: #{tpu_custom_call.1} parent=1 // pred_check
      _
    $region31: #{tpu_custom_call.1} parent=1 // pred_check_branch
      %98 = sbr.rel (0) target = $region33
    $region32: #{tpu_custom_call.1} parent=1 // pred_region
      %99 = dma.done [#allocation10], 1024
    $region33: #{tpu_custom_call.1} parent=1 // pred_fallthru
      _
    // Predicated region
    $region34: #{tpu_custom_call.1} parent=1 // pred_check
      _
    $region35: #{tpu_custom_call.1} parent=1 // pred_check_branch
      %101 = sbr.rel (0) target = $region37
    $region36: #{tpu_custom_call.1} parent=1 // pred_region
      %102 = dma.done [#allocation10], 1024
    $region37: #{tpu_custom_call.1} parent=1 // pred_fallthru
      _
    // Predicated region
    $region38: #{tpu_custom_call.1} parent=1 // pred_check
      _
    $region39: #{tpu_custom_call.1} parent=1 // pred_check_branch
      %104 = sbr.rel (0) target = $region41
    $region40: #{tpu_custom_call.1} parent=1 // pred_region
      %105 = dma.done [#allocation13], 1024
    $region41: #{tpu_custom_call.1} parent=1 // pred_fallthru
      _
    // Predicated region
    $region42: #{tpu_custom_call.1} parent=1 // pred_check
      _
    $region43: #{tpu_custom_call.1} parent=1 // pred_check_branch
      %107 = sbr.rel (0) target = $region45
    $region44: #{tpu_custom_call.1} parent=1 // pred_region
      %108 = dma.done [#allocation13], 1024
    $region45: #{tpu_custom_call.1} parent=1 // pred_fallthru
      _
    %s109 = sadd.s32 0, 0
    %s110 = smul.u32 %s109, 128
    %s111 = sadd.s32 %s110, 0
    %s112 = sld [smem:[#allocation5 + %s111]]
    %s113 = sadd.s32 0, 0
    %s114 = smul.u32 %s113, 128
    %s115 = sadd.s32 %s114, 0
    %s116 = sld [smem:[#allocation5 + %s115]]
    %s117 = smul.u32 16, %s116
    %p119 = scmp.eq.s32.totalorder 0, 0
    // Predicated region
    $region46: #{tpu_custom_call.1} parent=1 // pred_check
      %p120 = pneg %p119
    $region47: #{tpu_custom_call.1} parent=1 // pred_check_branch
      %122 = sbr.rel (%p120) target = $region49
    $region48: #{tpu_custom_call.1} parent=1 // pred_region
      %123 = vst [vmem:[#allocation2] sm:$0xff] 0.0
      %124 = vst [vmem:[#allocation2 + $0x8] sm:$0xff] 0.0
      %125 = vst [vmem:[#allocation2 + $0x10] sm:$0xff] 0.0
      %126 = vst [vmem:[#allocation2 + $0x18] sm:$0xff] 0.0
      %127 = vst [vmem:[#allocation2 + $0x20] sm:$0xff] 0.0
      %128 = vst [vmem:[#allocation2 + $0x28] sm:$0xff] 0.0
      %129 = vst [vmem:[#allocation2 + $0x30] sm:$0xff] 0.0
      %130 = vst [vmem:[#allocation2 + $0x38] sm:$0xff] 0.0
      %131 = vst [vmem:[#allocation2 + $0x40] sm:$0xff] 0.0
      %132 = vst [vmem:[#allocation2 + $0x48] sm:$0xff] 0.0
      %133 = vst [vmem:[#allocation2 + $0x50] sm:$0xff] 0.0
      %134 = vst [vmem:[#allocation2 + $0x58] sm:$0xff] 0.0
      %135 = vst [vmem:[#allocation2 + $0x60] sm:$0xff] 0.0
      %136 = vst [vmem:[#allocation2 + $0x68] sm:$0xff] 0.0
      %137 = vst [vmem:[#allocation2 + $0x70] sm:$0xff] 0.0
      %138 = vst [vmem:[#allocation2 + $0x78] sm:$0xff] 0.0
    $region49: #{tpu_custom_call.1} parent=1 // pred_fallthru
      _
    %s139 = sld [smem:[#allocation4]]
    %p140 = scmp.lt.s32.totalorder 0, %s139
    // Predicated region
    $region50: #{tpu_custom_call.1} parent=1 // pred_check
      %p141 = pneg %p140
    $region51: #{tpu_custom_call.1} parent=1 // pred_check_branch
      %143 = sbr.rel (%p141) target = $region53
    $region52: #{tpu_custom_call.1} parent=1 // pred_region
      %v144 = vld [vmem:[#allocation2] sm:$0xff]
      %v145 = vld [vmem:[#allocation2 + $0x8] sm:$0xff]
      %v146 = vld [vmem:[#allocation2 + $0x10] sm:$0xff]
      %v147 = vld [vmem:[#allocation2 + $0x18] sm:$0xff]
      %v148 = vld [vmem:[#allocation2 + $0x20] sm:$0xff]
      %v149 = vld [vmem:[#allocation2 + $0x28] sm:$0xff]
      %v150 = vld [vmem:[#allocation2 + $0x30] sm:$0xff]
      %v151 = vld [vmem:[#allocation2 + $0x38] sm:$0xff]
      %v152 = vld [vmem:[#allocation2 + $0x40] sm:$0xff]
      %v153 = vld [vmem:[#allocation2 + $0x48] sm:$0xff]
      %v154 = vld [vmem:[#allocation2 + $0x50] sm:$0xff]
      %v155 = vld [vmem:[#allocation2 + $0x58] sm:$0xff]
      %v156 = vld [vmem:[#allocation2 + $0x60] sm:$0xff]
      %v157 = vld [vmem:[#allocation2 + $0x68] sm:$0xff]
      %v158 = vld [vmem:[#allocation2 + $0x70] sm:$0xff]
      %v159 = vld [vmem:[#allocation2 + $0x78] sm:$0xff]
      %v160 = vld [vmem:[#allocation6] sm:$0xf]
      %v161 = vld [vmem:[#allocation6 + $0x4] sm:$0xf]
      %v162 = vld [vmem:[#allocation6 + $0x8] sm:$0xf]
      %v163 = vld [vmem:[#allocation6 + $0xc] sm:$0xf]
      %v164 = vld [vmem:[#allocation6 + $0x10] sm:$0xf]
      %v165 = vld [vmem:[#allocation6 + $0x14] sm:$0xf]
      %v166 = vld [vmem:[#allocation6 + $0x18] sm:$0xf]
      %v167 = vld [vmem:[#allocation6 + $0x1c] sm:$0xf]
      %v168 = vld [vmem:[#allocation6 + $0x20] sm:$0xf]
      %v169 = vld [vmem:[#allocation6 + $0x24] sm:$0xf]
      %v170 = vld [vmem:[#allocation6 + $0x28] sm:$0xf]
      %v171 = vld [vmem:[#allocation6 + $0x2c] sm:$0xf]
      %v172 = vld [vmem:[#allocation6 + $0x30] sm:$0xf]
      %v173 = vld [vmem:[#allocation6 + $0x34] sm:$0xf]
      %v174 = vld [vmem:[#allocation6 + $0x38] sm:$0xf]
      %v175 = vld [vmem:[#allocation6 + $0x3c] sm:$0xf]
      %v176 = vld [vmem:[#allocation9] sm:$0xf]
      %v177 = vld [vmem:[#allocation9 + $0x4] sm:$0xf]
      %v178 = vld [vmem:[#allocation9 + $0x8] sm:$0xf]
      %v179 = vld [vmem:[#allocation9 + $0xc] sm:$0xf]
      %v180 = vld [vmem:[#allocation9 + $0x10] sm:$0xf]
      %v181 = vld [vmem:[#allocation9 + $0x14] sm:$0xf]
      %v182 = vld [vmem:[#allocation9 + $0x18] sm:$0xf]
      %v183 = vld [vmem:[#allocation9 + $0x1c] sm:$0xf]
      %v184 = vld [vmem:[#allocation9 + $0x20] sm:$0xf]
      %v185 = vld [vmem:[#allocation9 + $0x24] sm:$0xf]
      %v186 = vld [vmem:[#allocation9 + $0x28] sm:$0xf]
      %v187 = vld [vmem:[#allocation9 + $0x2c] sm:$0xf]
      %v188 = vld [vmem:[#allocation9 + $0x30] sm:$0xf]
      %v189 = vld [vmem:[#allocation9 + $0x34] sm:$0xf]
      %v190 = vld [vmem:[#allocation9 + $0x38] sm:$0xf]
      %v191 = vld [vmem:[#allocation9 + $0x3c] sm:$0xf]
      %v208 = vunpack.c.l.b16 %v160
      %v209 = vunpack.c.l.b16 %v161
      %v210 = vunpack.c.l.b16 %v162
      %v211 = vunpack.c.l.b16 %v163
      %v212 = vunpack.c.l.b16 %v164
      %v213 = vunpack.c.l.b16 %v165
      %v214 = vunpack.c.l.b16 %v166
      %v215 = vunpack.c.l.b16 %v167
      %v216 = vunpack.c.l.b16 %v168
      %v217 = vunpack.c.l.b16 %v169
      %v218 = vunpack.c.l.b16 %v170
      %v219 = vunpack.c.l.b16 %v171
      %v220 = vunpack.c.l.b16 %v172
      %v221 = vunpack.c.l.b16 %v173
      %v222 = vunpack.c.l.b16 %v174
      %v223 = vunpack.c.l.b16 %v175
      %v224 = vpack.c.b16 %v209, %v208
      %v225 = vpack.c.b16 %v211, %v210
      %v226 = vpack.c.b16 %v213, %v212
      %v227 = vpack.c.b16 %v215, %v214
      %v228 = vpack.c.b16 %v217, %v216
      %v229 = vpack.c.b16 %v219, %v218
      %v230 = vpack.c.b16 %v221, %v220
      %v231 = vpack.c.b16 %v223, %v222
      %v256 = vunpack.c.l.b16 %v176
      %v257 = vunpack.c.l.b16 %v177
      %v258 = vunpack.c.l.b16 %v178
      %v259 = vunpack.c.l.b16 %v179
      %v260 = vunpack.c.l.b16 %v180
      %v261 = vunpack.c.l.b16 %v181
      %v262 = vunpack.c.l.b16 %v182
      %v263 = vunpack.c.l.b16 %v183
      %v264 = vunpack.c.l.b16 %v184
      %v265 = vunpack.c.l.b16 %v185
      %v266 = vunpack.c.l.b16 %v186
      %v267 = vunpack.c.l.b16 %v187
      %v268 = vunpack.c.l.b16 %v188
      %v269 = vunpack.c.l.b16 %v189
      %v270 = vunpack.c.l.b16 %v190
      %v271 = vunpack.c.l.b16 %v191
      %v272 = vpack.c.b16 %v257, %v256
      %v273 = vpack.c.b16 %v259, %v258
      %v274 = vpack.c.b16 %v261, %v260
      %v275 = vpack.c.b16 %v263, %v262
      %v276 = vpack.c.b16 %v265, %v264
      %v277 = vpack.c.b16 %v267, %v266
      %v278 = vpack.c.b16 %v269, %v268
      %v279 = vpack.c.b16 %v271, %v270
      %288 = vmatprep.subr.bf16.mxu0 0
      %289 = vmatpush1.bf16.msra.mxu0 %v279
      %290 = vmatprep.subr.bf16.mxu0 0
      %291 = vmatpush1.bf16.msra.mxu0 %v278
      %292 = vmatprep.subr.bf16.mxu0 0
      %293 = vmatpush1.bf16.msra.mxu0 %v277
      %294 = vmatprep.subr.bf16.mxu0 0
      %295 = vmatpush1.bf16.msra.mxu0 %v276
      %296 = vmatprep.subr.bf16.mxu0 0
      %297 = vmatpush1.bf16.msra.mxu0 %v275
      %298 = vmatprep.subr.bf16.mxu0 0
      %299 = vmatpush1.bf16.msra.mxu0 %v274
      %300 = vmatprep.subr.bf16.mxu0 0
      %301 = vmatpush1.bf16.msra.mxu0 %v273
      %302 = vmatprep.subr.bf16.mxu0 0
      %303 = vmatpush1.bf16.msra.mxu0 %v272
      %304 = vmatprep.subr.bf16.mxu0 0
      %305 = vmatpush2.bf16.msra.mxu0 0
      %306 = vmatprep.subr.bf16.mxu0 0
      %307 = vmatpush2.bf16.msra.mxu0 0
      %308 = vmatprep.subr.bf16.mxu0 0
      %309 = vmatpush2.bf16.msra.mxu0 0
      %310 = vmatprep.subr.bf16.mxu0 0
      %311 = vmatpush2.bf16.msra.mxu0 0
      %312 = vmatprep.subr.bf16.mxu0 0
      %313 = vmatpush2.bf16.msra.mxu0 0
      %314 = vmatprep.subr.bf16.mxu0 0
      %315 = vmatpush2.bf16.msra.mxu0 0
      %316 = vmatprep.subr.bf16.mxu0 0
      %317 = vmatpush2.bf16.msra.mxu0 0
      %318 = vmatprep.subr.bf16.mxu0 0
      %319 = vmatpush2.bf16.msra.mxu0 0
      %320 = vmatprep.mubr.bf16.mxu0 0
      %321 = vmatmul.mubr.bf16.gmra.mxu0 %v224
      %v322 = vpop.f32.mrf.mxu0
      %v323 = vadd.f32 0.0, %v322
      %v324 = vpop.f32.mrf.mxu0
      %v325 = vpop.f32.mrf.mxu0
      %v326 = vadd.f32 0.0, %v325
      %v327 = vpop.f32.mrf.mxu0
      %328 = vmatprep.mubr.bf16.mxu0 0
      %329 = vmatmul.mubr.bf16.gmra.mxu0 %v225
      %v330 = vpop.f32.mrf.mxu0
      %v331 = vadd.f32 0.0, %v330
      %v332 = vpop.f32.mrf.mxu0
      %v333 = vpop.f32.mrf.mxu0
      %v334 = vadd.f32 0.0, %v333
      %v335 = vpop.f32.mrf.mxu0
      %336 = vmatprep.mubr.bf16.mxu0 0
      %337 = vmatmul.mubr.bf16.gmra.mxu0 %v226
      %v338 = vpop.f32.mrf.mxu0
      %v339 = vadd.f32 0.0, %v338
      %v340 = vpop.f32.mrf.mxu0
      %v341 = vpop.f32.mrf.mxu0
      %v342 = vadd.f32 0.0, %v341
      %v343 = vpop.f32.mrf.mxu0
      %344 = vmatprep.mubr.bf16.mxu0 0
      %345 = vmatmul.mubr.bf16.gmra.mxu0 %v227
      %v346 = vpop.f32.mrf.mxu0
      %v347 = vadd.f32 0.0, %v346
      %v348 = vpop.f32.mrf.mxu0
      %v349 = vpop.f32.mrf.mxu0
      %v350 = vadd.f32 0.0, %v349
      %v351 = vpop.f32.mrf.mxu0
      %352 = vmatprep.mubr.bf16.mxu0 0
      %353 = vmatmul.mubr.bf16.gmra.mxu0 %v228
      %v354 = vpop.f32.mrf.mxu0
      %v355 = vadd.f32 0.0, %v354
      %v356 = vpop.f32.mrf.mxu0
      %v357 = vpop.f32.mrf.mxu0
      %v358 = vadd.f32 0.0, %v357
      %v359 = vpop.f32.mrf.mxu0
      %360 = vmatprep.mubr.bf16.mxu0 0
      %361 = vmatmul.mubr.bf16.gmra.mxu0 %v229
      %v362 = vpop.f32.mrf.mxu0
      %v363 = vadd.f32 0.0, %v362
      %v364 = vpop.f32.mrf.mxu0
      %v365 = vpop.f32.mrf.mxu0
      %v366 = vadd.f32 0.0, %v365
      %v367 = vpop.f32.mrf.mxu0
      %368 = vmatprep.mubr.bf16.mxu0 0
      %369 = vmatmul.mubr.bf16.gmra.mxu0 %v230
      %v370 = vpop.f32.mrf.mxu0
      %v371 = vadd.f32 0.0, %v370
      %v372 = vpop.f32.mrf.mxu0
      %v373 = vpop.f32.mrf.mxu0
      %v374 = vadd.f32 0.0, %v373
      %v375 = vpop.f32.mrf.mxu0
      %376 = vmatprep.mubr.bf16.mxu0 0
      %377 = vmatmul.mubr.bf16.gmra.mxu0 %v231
      %v378 = vpop.f32.mrf.mxu0
      %v379 = vadd.f32 0.0, %v378
      %v380 = vpop.f32.mrf.mxu0
      %v381 = vpop.f32.mrf.mxu0
      %v382 = vadd.f32 0.0, %v381
      %v383 = vpop.f32.mrf.mxu0
      %384 = vdwg.mxu0
      %v385 = vadd.f32 %v144, %v323
      %v386 = vadd.f32 %v145, %v326
      %v387 = vadd.f32 %v146, %v331
      %v388 = vadd.f32 %v147, %v334
      %v389 = vadd.f32 %v148, %v339
      %v390 = vadd.f32 %v149, %v342
      %v391 = vadd.f32 %v150, %v347
      %v392 = vadd.f32 %v151, %v350
      %v393 = vadd.f32 %v152, %v355
      %v394 = vadd.f32 %v153, %v358
      %v395 = vadd.f32 %v154, %v363
      %v396 = vadd.f32 %v155, %v366
      %v397 = vadd.f32 %v156, %v371
      %v398 = vadd.f32 %v157, %v374
      %v399 = vadd.f32 %v158, %v379
      %v400 = vadd.f32 %v159, %v382
      %401 = vst [vmem:[#allocation2] sm:$0xff] %v385
      %402 = vst [vmem:[#allocation2 + $0x8] sm:$0xff] %v386
      %403 = vst [vmem:[#allocation2 + $0x10] sm:$0xff] %v387
      %404 = vst [vmem:[#allocation2 + $0x18] sm:$0xff] %v388
      %405 = vst [vmem:[#allocation2 + $0x20] sm:$0xff] %v389
      %406 = vst [vmem:[#allocation2 + $0x28] sm:$0xff] %v390
      %407 = vst [vmem:[#allocation2 + $0x30] sm:$0xff] %v391
      %408 = vst [vmem:[#allocation2 + $0x38] sm:$0xff] %v392
      %409 = vst [vmem:[#allocation2 + $0x40] sm:$0xff] %v393
      %410 = vst [vmem:[#allocation2 + $0x48] sm:$0xff] %v394
      %411 = vst [vmem:[#allocation2 + $0x50] sm:$0xff] %v395
      %412 = vst [vmem:[#allocation2 + $0x58] sm:$0xff] %v396
      %413 = vst [vmem:[#allocation2 + $0x60] sm:$0xff] %v397
      %414 = vst [vmem:[#allocation2 + $0x68] sm:$0xff] %v398
      %415 = vst [vmem:[#allocation2 + $0x70] sm:$0xff] %v399
      %416 = vst [vmem:[#allocation2 + $0x78] sm:$0xff] %v400
    $region53: #{tpu_custom_call.1} parent=1 // pred_fallthru
      _
    // Predicated region
    $region54: #{tpu_custom_call.1} parent=1 // pred_check
      %p417 = pneg %p119
    $region55: #{tpu_custom_call.1} parent=1 // pred_check_branch
      %419 = sbr.rel (%p417) target = $region57
    $region56: #{tpu_custom_call.1} parent=1 // pred_region
      %v420 = vld [vmem:[#allocation2] sm:$0xff]
      %v421 = vld [vmem:[#allocation2 + $0x8] sm:$0xff]
      %v422 = vld [vmem:[#allocation2 + $0x10] sm:$0xff]
      %v423 = vld [vmem:[#allocation2 + $0x18] sm:$0xff]
      %v424 = vld [vmem:[#allocation2 + $0x20] sm:$0xff]
      %v425 = vld [vmem:[#allocation2 + $0x28] sm:$0xff]
      %v426 = vld [vmem:[#allocation2 + $0x30] sm:$0xff]
      %v427 = vld [vmem:[#allocation2 + $0x38] sm:$0xff]
      %v428 = vld [vmem:[#allocation2 + $0x40] sm:$0xff]
      %v429 = vld [vmem:[#allocation2 + $0x48] sm:$0xff]
      %v430 = vld [vmem:[#allocation2 + $0x50] sm:$0xff]
      %v431 = vld [vmem:[#allocation2 + $0x58] sm:$0xff]
      %v432 = vld [vmem:[#allocation2 + $0x60] sm:$0xff]
      %v433 = vld [vmem:[#allocation2 + $0x68] sm:$0xff]
      %v434 = vld [vmem:[#allocation2 + $0x70] sm:$0xff]
      %v435 = vld [vmem:[#allocation2 + $0x78] sm:$0xff]
      %v436 = vpack.c.bf16 %v421, %v420
      %v437 = vpack.c.bf16 %v423, %v422
      %v438 = vpack.c.bf16 %v425, %v424
      %v439 = vpack.c.bf16 %v427, %v426
      %v440 = vpack.c.bf16 %v429, %v428
      %v441 = vpack.c.bf16 %v431, %v430
      %v442 = vpack.c.bf16 %v433, %v432
      %v443 = vpack.c.bf16 %v435, %v434
      %v444 = vld [vmem:[#allocation11] sm:$0xf]
      %v445 = vld [vmem:[#allocation11 + $0x4] sm:$0xf]
      %v446 = vld [vmem:[#allocation11 + $0x8] sm:$0xf]
      %v447 = vld [vmem:[#allocation11 + $0xc] sm:$0xf]
      %v448 = vld [vmem:[#allocation11 + $0x10] sm:$0xf]
      %v449 = vld [vmem:[#allocation11 + $0x14] sm:$0xf]
      %v450 = vld [vmem:[#allocation11 + $0x18] sm:$0xf]
      %v451 = vld [vmem:[#allocation11 + $0x1c] sm:$0xf]
      %v452 = vld [vmem:[#allocation11 + $0x20] sm:$0xf]
      %v453 = vld [vmem:[#allocation11 + $0x24] sm:$0xf]
      %v454 = vld [vmem:[#allocation11 + $0x28] sm:$0xf]
      %v455 = vld [vmem:[#allocation11 + $0x2c] sm:$0xf]
      %v456 = vld [vmem:[#allocation11 + $0x30] sm:$0xf]
      %v457 = vld [vmem:[#allocation11 + $0x34] sm:$0xf]
      %v458 = vld [vmem:[#allocation11 + $0x38] sm:$0xf]
      %v459 = vld [vmem:[#allocation11 + $0x3c] sm:$0xf]
      %v460 = vld [vmem:[%s5] sm:$0x1]
      %v462 = vlaneseq
      %v463 = vshrl.u32 %v462, 7
      %v464 = vsub.s32 0, %v463
      %v465 = vrot.slane %v460, %v464
      %v483 = vunpack.c.l.b16 %v444
      %v484 = vunpack.c.l.b16 %v445
      %v485 = vunpack.c.l.b16 %v446
      %v486 = vunpack.c.l.b16 %v447
      %v487 = vunpack.c.l.b16 %v448
      %v488 = vunpack.c.l.b16 %v449
      %v489 = vunpack.c.l.b16 %v450
      %v490 = vunpack.c.l.b16 %v451
      %v491 = vunpack.c.l.b16 %v452
      %v492 = vunpack.c.l.b16 %v453
      %v493 = vunpack.c.l.b16 %v454
      %v494 = vunpack.c.l.b16 %v455
      %v495 = vunpack.c.l.b16 %v456
      %v496 = vunpack.c.l.b16 %v457
      %v497 = vunpack.c.l.b16 %v458
      %v498 = vunpack.c.l.b16 %v459
      %v499 = vpack.c.b16 %v484, %v483
      %v500 = vpack.c.b16 %v486, %v485
      %v501 = vpack.c.b16 %v488, %v487
      %v502 = vpack.c.b16 %v490, %v489
      %v503 = vpack.c.b16 %v492, %v491
      %v504 = vpack.c.b16 %v494, %v493
      %v505 = vpack.c.b16 %v496, %v495
      %v506 = vpack.c.b16 %v498, %v497
      %515 = vmatprep.subr.bf16.mxu0 0
      %516 = vmatpush1.bf16.msra.mxu0 %v506
      %517 = vmatprep.subr.bf16.mxu0 0
      %518 = vmatpush1.bf16.msra.mxu0 %v505
      %519 = vmatprep.subr.bf16.mxu0 0
      %520 = vmatpush1.bf16.msra.mxu0 %v504
      %521 = vmatprep.subr.bf16.mxu0 0
      %522 = vmatpush1.bf16.msra.mxu0 %v503
      %523 = vmatprep.subr.bf16.mxu0 0
      %524 = vmatpush1.bf16.msra.mxu0 %v502
      %525 = vmatprep.subr.bf16.mxu0 0
      %526 = vmatpush1.bf16.msra.mxu0 %v501
      %527 = vmatprep.subr.bf16.mxu0 0
      %528 = vmatpush1.bf16.msra.mxu0 %v500
      %529 = vmatprep.subr.bf16.mxu0 0
      %530 = vmatpush1.bf16.msra.mxu0 %v499
      %531 = vmatprep.subr.bf16.mxu0 0
      %532 = vmatpush2.bf16.msra.mxu0 0
      %533 = vmatprep.subr.bf16.mxu0 0
      %534 = vmatpush2.bf16.msra.mxu0 0
      %535 = vmatprep.subr.bf16.mxu0 0
      %536 = vmatpush2.bf16.msra.mxu0 0
      %537 = vmatprep.subr.bf16.mxu0 0
      %538 = vmatpush2.bf16.msra.mxu0 0
      %539 = vmatprep.subr.bf16.mxu0 0
      %540 = vmatpush2.bf16.msra.mxu0 0
      %541 = vmatprep.subr.bf16.mxu0 0
      %542 = vmatpush2.bf16.msra.mxu0 0
      %543 = vmatprep.subr.bf16.mxu0 0
      %544 = vmatpush2.bf16.msra.mxu0 0
      %545 = vmatprep.subr.bf16.mxu0 0
      %546 = vmatpush2.bf16.msra.mxu0 0
      %547 = vmatprep.mubr.bf16.mxu0 0
      %548 = vmatmul.mubr.bf16.gmra.mxu0 %v436
      %v549 = vpop.f32.mrf.mxu0
      %v550 = vadd.f32 %v465, %v549
      %v551 = vpop.f32.mrf.mxu0
      %v552 = vpop.f32.mrf.mxu0
      %v553 = vadd.f32 %v465, %v552
      %v554 = vpop.f32.mrf.mxu0
      %555 = vmatprep.mubr.bf16.mxu0 0
      %556 = vmatmul.mubr.bf16.gmra.mxu0 %v437
      %v557 = vpop.f32.mrf.mxu0
      %v558 = vadd.f32 %v465, %v557
      %v559 = vpop.f32.mrf.mxu0
      %v560 = vpop.f32.mrf.mxu0
      %v561 = vadd.f32 %v465, %v560
      %v562 = vpop.f32.mrf.mxu0
      %563 = vmatprep.mubr.bf16.mxu0 0
      %564 = vmatmul.mubr.bf16.gmra.mxu0 %v438
      %v565 = vpop.f32.mrf.mxu0
      %v566 = vadd.f32 %v465, %v565
      %v567 = vpop.f32.mrf.mxu0
      %v568 = vpop.f32.mrf.mxu0
      %v569 = vadd.f32 %v465, %v568
      %v570 = vpop.f32.mrf.mxu0
      %571 = vmatprep.mubr.bf16.mxu0 0
      %572 = vmatmul.mubr.bf16.gmra.mxu0 %v439
      %v573 = vpop.f32.mrf.mxu0
      %v574 = vadd.f32 %v465, %v573
      %v575 = vpop.f32.mrf.mxu0
      %v576 = vpop.f32.mrf.mxu0
      %v577 = vadd.f32 %v465, %v576
      %v578 = vpop.f32.mrf.mxu0
      %579 = vmatprep.mubr.bf16.mxu0 0
      %580 = vmatmul.mubr.bf16.gmra.mxu0 %v440
      %v581 = vpop.f32.mrf.mxu0
      %v582 = vadd.f32 %v465, %v581
      %v583 = vpop.f32.mrf.mxu0
      %v584 = vpop.f32.mrf.mxu0
      %v585 = vadd.f32 %v465, %v584
      %v586 = vpop.f32.mrf.mxu0
      %587 = vmatprep.mubr.bf16.mxu0 0
      %588 = vmatmul.mubr.bf16.gmra.mxu0 %v441
      %v589 = vpop.f32.mrf.mxu0
      %v590 = vadd.f32 %v465, %v589
      %v591 = vpop.f32.mrf.mxu0
      %v592 = vpop.f32.mrf.mxu0
      %v593 = vadd.f32 %v465, %v592
      %v594 = vpop.f32.mrf.mxu0
      %595 = vmatprep.mubr.bf16.mxu0 0
      %596 = vmatmul.mubr.bf16.gmra.mxu0 %v442
      %v597 = vpop.f32.mrf.mxu0
      %v598 = vadd.f32 %v465, %v597
      %v599 = vpop.f32.mrf.mxu0
      %v600 = vpop.f32.mrf.mxu0
      %v601 = vadd.f32 %v465, %v600
      %v602 = vpop.f32.mrf.mxu0
      %603 = vmatprep.mubr.bf16.mxu0 0
      %604 = vmatmul.mubr.bf16.gmra.mxu0 %v443
      %v605 = vpop.f32.mrf.mxu0
      %v606 = vadd.f32 %v465, %v605
      %v607 = vpop.f32.mrf.mxu0
      %v608 = vpop.f32.mrf.mxu0
      %v609 = vadd.f32 %v465, %v608
      %v610 = vpop.f32.mrf.mxu0
      %611 = vdwg.mxu0
      %v612 = vmax.f32 %v550, 0.0
      %v613 = vmax.f32 %v553, 0.0
      %v614 = vmax.f32 %v558, 0.0
      %v615 = vmax.f32 %v561, 0.0
      %v616 = vmax.f32 %v566, 0.0
      %v617 = vmax.f32 %v569, 0.0
      %v618 = vmax.f32 %v574, 0.0
      %v619 = vmax.f32 %v577, 0.0
      %v620 = vmax.f32 %v582, 0.0
      %v621 = vmax.f32 %v585, 0.0
      %v622 = vmax.f32 %v590, 0.0
      %v623 = vmax.f32 %v593, 0.0
      %v624 = vmax.f32 %v598, 0.0
      %v625 = vmax.f32 %v601, 0.0
      %v626 = vmax.f32 %v606, 0.0
      %v627 = vmax.f32 %v609, 0.0
      %v628 = vld [vmem:[#allocation14] sm:$0xf]
      %v629 = vld [vmem:[#allocation14 + $0x4] sm:$0xf]
      %v630 = vld [vmem:[#allocation14 + $0x8] sm:$0xf]
      %v631 = vld [vmem:[#allocation14 + $0xc] sm:$0xf]
      %v632 = vld [vmem:[#allocation14 + $0x10] sm:$0xf]
      %v633 = vld [vmem:[#allocation14 + $0x14] sm:$0xf]
      %v634 = vld [vmem:[#allocation14 + $0x18] sm:$0xf]
      %v635 = vld [vmem:[#allocation14 + $0x1c] sm:$0xf]
      %v636 = vld [vmem:[#allocation14 + $0x20] sm:$0xf]
      %v637 = vld [vmem:[#allocation14 + $0x24] sm:$0xf]
      %v638 = vld [vmem:[#allocation14 + $0x28] sm:$0xf]
      %v639 = vld [vmem:[#allocation14 + $0x2c] sm:$0xf]
      %v640 = vld [vmem:[#allocation14 + $0x30] sm:$0xf]
      %v641 = vld [vmem:[#allocation14 + $0x34] sm:$0xf]
      %v642 = vld [vmem:[#allocation14 + $0x38] sm:$0xf]
      %v643 = vld [vmem:[#allocation14 + $0x3c] sm:$0xf]
      %v644 = vunpack.c.l.bf16 %v628
      %v645 = vunpack.c.l.bf16 %v629
      %v646 = vunpack.c.l.bf16 %v630
      %v647 = vunpack.c.l.bf16 %v631
      %v648 = vunpack.c.l.bf16 %v632
      %v649 = vunpack.c.l.bf16 %v633
      %v650 = vunpack.c.l.bf16 %v634
      %v651 = vunpack.c.l.bf16 %v635
      %v652 = vunpack.c.l.bf16 %v636
      %v653 = vunpack.c.l.bf16 %v637
      %v654 = vunpack.c.l.bf16 %v638
      %v655 = vunpack.c.l.bf16 %v639
      %v656 = vunpack.c.l.bf16 %v640
      %v657 = vunpack.c.l.bf16 %v641
      %v658 = vunpack.c.l.bf16 %v642
      %v659 = vunpack.c.l.bf16 %v643
      %v660 = vmul.f32 %v612, %v644
      %v661 = vmul.f32 %v613, %v645
      %v662 = vmul.f32 %v614, %v646
      %v663 = vmul.f32 %v615, %v647
      %v664 = vmul.f32 %v616, %v648
      %v665 = vmul.f32 %v617, %v649
      %v666 = vmul.f32 %v618, %v650
      %v667 = vmul.f32 %v619, %v651
      %v668 = vmul.f32 %v620, %v652
      %v669 = vmul.f32 %v621, %v653
      %v670 = vmul.f32 %v622, %v654
      %v671 = vmul.f32 %v623, %v655
      %v672 = vmul.f32 %v624, %v656
      %v673 = vmul.f32 %v625, %v657
      %v674 = vmul.f32 %v626, %v658
      %v675 = vmul.f32 %v627, %v659
      %v676 = vpack.c.bf16 %v661, %v660
      %v677 = vpack.c.bf16 %v663, %v662
      %v678 = vpack.c.bf16 %v665, %v664
      %v679 = vpack.c.bf16 %v667, %v666
      %v680 = vpack.c.bf16 %v669, %v668
      %v681 = vpack.c.bf16 %v671, %v670
      %v682 = vpack.c.bf16 %v673, %v672
      %v683 = vpack.c.bf16 %v675, %v674
      %v684 = vld [vmem:[#allocation12] sm:$0xf]
      %v685 = vld [vmem:[#allocation12 + $0x4] sm:$0xf]
      %v686 = vld [vmem:[#allocation12 + $0x8] sm:$0xf]
      %v687 = vld [vmem:[#allocation12 + $0xc] sm:$0xf]
      %v688 = vld [vmem:[#allocation12 + $0x10] sm:$0xf]
      %v689 = vld [vmem:[#allocation12 + $0x14] sm:$0xf]
      %v690 = vld [vmem:[#allocation12 + $0x18] sm:$0xf]
      %v691 = vld [vmem:[#allocation12 + $0x1c] sm:$0xf]
      %v692 = vld [vmem:[#allocation12 + $0x20] sm:$0xf]
      %v693 = vld [vmem:[#allocation12 + $0x24] sm:$0xf]
      %v694 = vld [vmem:[#allocation12 + $0x28] sm:$0xf]
      %v695 = vld [vmem:[#allocation12 + $0x2c] sm:$0xf]
      %v696 = vld [vmem:[#allocation12 + $0x30] sm:$0xf]
      %v697 = vld [vmem:[#allocation12 + $0x34] sm:$0xf]
      %v698 = vld [vmem:[#allocation12 + $0x38] sm:$0xf]
      %v699 = vld [vmem:[#allocation12 + $0x3c] sm:$0xf]
      %v716 = vunpack.c.l.b16 %v684
      %v717 = vunpack.c.l.b16 %v685
      %v718 = vunpack.c.l.b16 %v686
      %v719 = vunpack.c.l.b16 %v687
      %v720 = vunpack.c.l.b16 %v688
      %v721 = vunpack.c.l.b16 %v689
      %v722 = vunpack.c.l.b16 %v690
      %v723 = vunpack.c.l.b16 %v691
      %v724 = vunpack.c.l.b16 %v692
      %v725 = vunpack.c.l.b16 %v693
      %v726 = vunpack.c.l.b16 %v694
      %v727 = vunpack.c.l.b16 %v695
      %v728 = vunpack.c.l.b16 %v696
      %v729 = vunpack.c.l.b16 %v697
      %v730 = vunpack.c.l.b16 %v698
      %v731 = vunpack.c.l.b16 %v699
      %v732 = vpack.c.b16 %v717, %v716
      %v733 = vpack.c.b16 %v719, %v718
      %v734 = vpack.c.b16 %v721, %v720
      %v735 = vpack.c.b16 %v723, %v722
      %v736 = vpack.c.b16 %v725, %v724
      %v737 = vpack.c.b16 %v727, %v726
      %v738 = vpack.c.b16 %v729, %v728
      %v739 = vpack.c.b16 %v731, %v730
      %748 = vmatprep.subr.bf16.mxu0 0
      %749 = vmatpush1.bf16.msra.mxu0 %v739
      %750 = vmatprep.subr.bf16.mxu0 0
      %751 = vmatpush1.bf16.msra.mxu0 %v738
      %752 = vmatprep.subr.bf16.mxu0 0
      %753 = vmatpush1.bf16.msra.mxu0 %v737
      %754 = vmatprep.subr.bf16.mxu0 0
      %755 = vmatpush1.bf16.msra.mxu0 %v736
      %756 = vmatprep.subr.bf16.mxu0 0
      %757 = vmatpush1.bf16.msra.mxu0 %v735
      %758 = vmatprep.subr.bf16.mxu0 0
      %759 = vmatpush1.bf16.msra.mxu0 %v734
      %760 = vmatprep.subr.bf16.mxu0 0
      %761 = vmatpush1.bf16.msra.mxu0 %v733
      %762 = vmatprep.subr.bf16.mxu0 0
      %763 = vmatpush1.bf16.msra.mxu0 %v732
      %764 = vmatprep.subr.bf16.mxu0 0
      %765 = vmatpush2.bf16.msra.mxu0 0
      %766 = vmatprep.subr.bf16.mxu0 0
      %767 = vmatpush2.bf16.msra.mxu0 0
      %768 = vmatprep.subr.bf16.mxu0 0
      %769 = vmatpush2.bf16.msra.mxu0 0
      %770 = vmatprep.subr.bf16.mxu0 0
      %771 = vmatpush2.bf16.msra.mxu0 0
      %772 = vmatprep.subr.bf16.mxu0 0
      %773 = vmatpush2.bf16.msra.mxu0 0
      %774 = vmatprep.subr.bf16.mxu0 0
      %775 = vmatpush2.bf16.msra.mxu0 0
      %776 = vmatprep.subr.bf16.mxu0 0
      %777 = vmatpush2.bf16.msra.mxu0 0
      %778 = vmatprep.subr.bf16.mxu0 0
      %779 = vmatpush2.bf16.msra.mxu0 0
      %780 = vmatprep.mubr.bf16.mxu0 0
      %781 = vmatmul.mubr.bf16.gmra.mxu0 %v676
      %v782 = vpop.f32.mrf.mxu0
      %v783 = vadd.f32 0.0, %v782
      %v784 = vpop.f32.mrf.mxu0
      %v785 = vpop.f32.mrf.mxu0
      %v786 = vadd.f32 0.0, %v785
      %v787 = vpop.f32.mrf.mxu0
      %788 = vmatprep.mubr.bf16.mxu0 0
      %789 = vmatmul.mubr.bf16.gmra.mxu0 %v677
      %v790 = vpop.f32.mrf.mxu0
      %v791 = vadd.f32 0.0, %v790
      %v792 = vpop.f32.mrf.mxu0
      %v793 = vpop.f32.mrf.mxu0
      %v794 = vadd.f32 0.0, %v793
      %v795 = vpop.f32.mrf.mxu0
      %796 = vmatprep.mubr.bf16.mxu0 0
      %797 = vmatmul.mubr.bf16.gmra.mxu0 %v678
      %v798 = vpop.f32.mrf.mxu0
      %v799 = vadd.f32 0.0, %v798
      %v800 = vpop.f32.mrf.mxu0
      %v801 = vpop.f32.mrf.mxu0
      %v802 = vadd.f32 0.0, %v801
      %v803 = vpop.f32.mrf.mxu0
      %804 = vmatprep.mubr.bf16.mxu0 0
      %805 = vmatmul.mubr.bf16.gmra.mxu0 %v679
      %v806 = vpop.f32.mrf.mxu0
      %v807 = vadd.f32 0.0, %v806
      %v808 = vpop.f32.mrf.mxu0
      %v809 = vpop.f32.mrf.mxu0
      %v810 = vadd.f32 0.0, %v809
      %v811 = vpop.f32.mrf.mxu0
      %812 = vmatprep.mubr.bf16.mxu0 0
      %813 = vmatmul.mubr.bf16.gmra.mxu0 %v680
      %v814 = vpop.f32.mrf.mxu0
      %v815 = vadd.f32 0.0, %v814
      %v816 = vpop.f32.mrf.mxu0
      %v817 = vpop.f32.mrf.mxu0
      %v818 = vadd.f32 0.0, %v817
      %v819 = vpop.f32.mrf.mxu0
      %820 = vmatprep.mubr.bf16.mxu0 0
      %821 = vmatmul.mubr.bf16.gmra.mxu0 %v681
      %v822 = vpop.f32.mrf.mxu0
      %v823 = vadd.f32 0.0, %v822
      %v824 = vpop.f32.mrf.mxu0
      %v825 = vpop.f32.mrf.mxu0
      %v826 = vadd.f32 0.0, %v825
      %v827 = vpop.f32.mrf.mxu0
      %828 = vmatprep.mubr.bf16.mxu0 0
      %829 = vmatmul.mubr.bf16.gmra.mxu0 %v682
      %v830 = vpop.f32.mrf.mxu0
      %v831 = vadd.f32 0.0, %v830
      %v832 = vpop.f32.mrf.mxu0
      %v833 = vpop.f32.mrf.mxu0
      %v834 = vadd.f32 0.0, %v833
      %v835 = vpop.f32.mrf.mxu0
      %836 = vmatprep.mubr.bf16.mxu0 0
      %837 = vmatmul.mubr.bf16.gmra.mxu0 %v683
      %v838 = vpop.f32.mrf.mxu0
      %v839 = vadd.f32 0.0, %v838
      %v840 = vpop.f32.mrf.mxu0
      %v841 = vpop.f32.mrf.mxu0
      %v842 = vadd.f32 0.0, %v841
      %v843 = vpop.f32.mrf.mxu0
      %844 = vdwg.mxu0
      %v845 = vpack.c.bf16 %v786, %v783
      %v846 = vpack.c.bf16 %v794, %v791
      %v847 = vpack.c.bf16 %v802, %v799
      %v848 = vpack.c.bf16 %v810, %v807
      %v849 = vpack.c.bf16 %v818, %v815
      %v850 = vpack.c.bf16 %v826, %v823
      %v851 = vpack.c.bf16 %v834, %v831
      %v852 = vpack.c.bf16 %v842, %v839
      %v861 = vunpack.c.l.b16 %v845
      %v862 = vunpack.c.h.b16 %v845
      %v863 = vunpack.c.l.b16 %v846
      %v864 = vunpack.c.h.b16 %v846
      %v865 = vunpack.c.l.b16 %v847
      %v866 = vunpack.c.h.b16 %v847
      %v867 = vunpack.c.l.b16 %v848
      %v868 = vunpack.c.h.b16 %v848
      %v869 = vunpack.c.l.b16 %v849
      %v870 = vunpack.c.h.b16 %v849
      %v871 = vunpack.c.l.b16 %v850
      %v872 = vunpack.c.h.b16 %v850
      %v873 = vunpack.c.l.b16 %v851
      %v874 = vunpack.c.h.b16 %v851
      %v875 = vunpack.c.l.b16 %v852
      %v876 = vunpack.c.h.b16 %v852
      %v877 = vpack.c.b16 %v861, %v861
      %v878 = vpack.c.b16 %v862, %v862
      %v879 = vpack.c.b16 %v863, %v863
      %v880 = vpack.c.b16 %v864, %v864
      %v881 = vpack.c.b16 %v865, %v865
      %v882 = vpack.c.b16 %v866, %v866
      %v883 = vpack.c.b16 %v867, %v867
      %v884 = vpack.c.b16 %v868, %v868
      %v885 = vpack.c.b16 %v869, %v869
      %v886 = vpack.c.b16 %v870, %v870
      %v887 = vpack.c.b16 %v871, %v871
      %v888 = vpack.c.b16 %v872, %v872
      %v889 = vpack.c.b16 %v873, %v873
      %v890 = vpack.c.b16 %v874, %v874
      %v891 = vpack.c.b16 %v875, %v875
      %v892 = vpack.c.b16 %v876, %v876
      %909 = vst [vmem:[#allocation15] sm:$0xf] %v877
      %910 = vst [vmem:[#allocation15 + $0x4] sm:$0xf] %v878
      %911 = vst [vmem:[#allocation15 + $0x8] sm:$0xf] %v879
      %912 = vst [vmem:[#allocation15 + $0xc] sm:$0xf] %v880
      %913 = vst [vmem:[#allocation15 + $0x10] sm:$0xf] %v881
      %914 = vst [vmem:[#allocation15 + $0x14] sm:$0xf] %v882
      %915 = vst [vmem:[#allocation15 + $0x18] sm:$0xf] %v883
      %916 = vst [vmem:[#allocation15 + $0x1c] sm:$0xf] %v884
      %917 = vst [vmem:[#allocation15 + $0x20] sm:$0xf] %v885
      %918 = vst [vmem:[#allocation15 + $0x24] sm:$0xf] %v886
      %919 = vst [vmem:[#allocation15 + $0x28] sm:$0xf] %v887
      %920 = vst [vmem:[#allocation15 + $0x2c] sm:$0xf] %v888
      %921 = vst [vmem:[#allocation15 + $0x30] sm:$0xf] %v889
      %922 = vst [vmem:[#allocation15 + $0x34] sm:$0xf] %v890
      %923 = vst [vmem:[#allocation15 + $0x38] sm:$0xf] %v891
      %924 = vst [vmem:[#allocation15 + $0x3c] sm:$0xf] %v892
    $region57: #{tpu_custom_call.1} parent=1 // pred_fallthru
      _
    // Predicated region
    $region58: #{tpu_custom_call.1} parent=1 // pred_check
      _
    $region59: #{tpu_custom_call.1} parent=1 // pred_check_branch
      %926 = sbr.rel (0) target = $region61
    $region60: #{tpu_custom_call.1} parent=1 // pred_region
      %s928 = ssub.s32 1024, 1024
      %929 = vsyncadd [#allocation8], %s928
      %s930 = sshll.u32 [#allocation15], 4
      %s931 = int_to_ptr.vmem [resolvable:$true] %s930
      %936 = dma.vmem_to_hbm [thread:$0]  %s931, 1024, %s8, [#allocation8], 64, 64, 4
    $region61: #{tpu_custom_call.1} parent=1 // pred_fallthru
      _
    // Predicated region
    $region62: #{tpu_custom_call.1} parent=1 // pred_check
      _
    $region63: #{tpu_custom_call.1} parent=1 // pred_check_branch
      %938 = sbr.rel (0) target = $region65
    $region64: #{tpu_custom_call.1} parent=1 // pred_region
      %939 = dma.done [#allocation8], 1024
    $region65: #{tpu_custom_call.1} parent=1 // pred_fallthru
      _
    %940 = vsyncpa [#allocation7], 1
    %941 = vsyncpa [#allocation10], 1
    %942 = vsyncpa [#allocation13], 1
    %943 = vsyncpa [#allocation8], 1

</llo_original>
